<compile_context>
chip_gen: v5e
topology: v5e:2x2
jax: 0.10.0
libtpu: 0.0.40
codegen_flags: <defaults>
</compile_context>

<pallas_src>
import math

import jax
import jax.numpy as jnp
from jax.experimental import pallas as pl
from jax.experimental.pallas import tpu as pltpu

_LANE = 128


# ---------------------------------------------------------------------------
# Pallas kernel: fused 3-layer MLP classifier head (BN pre-folded into weights)
# ---------------------------------------------------------------------------
def _clf_kernel(x_ref, w1_ref, sh1_ref, w2_ref, sh2_ref, w3_ref, b3_ref, o_ref):
    # Layer 1: Linear(no bias, BN scale folded into W1) -> +shift -> ReLU
    h1 = jnp.dot(x_ref[...], w1_ref[...], preferred_element_type=jnp.float32)
    h1 = jnp.maximum(h1 + sh1_ref[...], 0.0)
    # dp1: dropout is identity in eval mode

    # Layer 2: Linear(no bias, BN scale folded into W2) -> +shift -> ReLU
    h2 = jnp.dot(h1.astype(jnp.bfloat16), w2_ref[...],
                 preferred_element_type=jnp.float32)
    h2 = jnp.maximum(h2 + sh2_ref[...], 0.0)
    # dp2: dropout is identity in eval mode

    # Layer 3: Linear with bias -> logits (class dim lane-padded to 128)
    o_ref[...] = (jnp.dot(h2.astype(jnp.bfloat16), w3_ref[...],
                          preferred_element_type=jnp.float32)
                  + b3_ref[...]).astype(o_ref.dtype)


# ---------------------------------------------------------------------------
# One-time parameter preparation: fold BN, cast weights to bf16, lane-pad C
# ---------------------------------------------------------------------------
def prepare_params(params, eps=1e-5):
    s1 = params["bn1_gamma"] / jnp.sqrt(params["bn1_var"] + eps)
    sh1 = params["bn1_beta"] - params["bn1_mean"] * s1
    s2 = params["bn2_gamma"] / jnp.sqrt(params["bn2_var"] + eps)
    sh2 = params["bn2_beta"] - params["bn2_mean"] * s2

    H2, C = params["w3"].shape
    Cp = max(_LANE, ((C + _LANE - 1) // _LANE) * _LANE)

    w3p = jnp.zeros((H2, Cp), jnp.float32).at[:, :C].set(params["w3"])
    b3p = jnp.zeros((1, Cp), jnp.float32).at[:, :C].set(params["b3"])

    return {
        "w1": (params["w1"] * s1[None, :]).astype(jnp.bfloat16),
        "sh1": sh1.reshape(1, -1).astype(jnp.float32),
        "w2": (params["w2"] * s2[None, :]).astype(jnp.bfloat16),
        "sh2": sh2.reshape(1, -1).astype(jnp.float32),
        "w3": w3p.astype(jnp.bfloat16),
        "b3": b3p,
        "num_classes": C,
    }


# ---------------------------------------------------------------------------
# Wrapper: tiles the batch, keeps weights VMEM-resident, slices padded logits
# ---------------------------------------------------------------------------
def uvnet_classifier_head(graph_emb, prepped):
    """Runs the fused classifier head on a (batch, graph_emb_dim) embedding."""
    B, D = graph_emb.shape
    w1, sh1 = prepped["w1"], prepped["sh1"]
    w2, sh2 = prepped["w2"], prepped["sh2"]
    w3, b3 = prepped["w3"], prepped["b3"]
    H1 = w1.shape[1]
    H2 = w2.shape[1]
    Cp = w3.shape[1]
    C = prepped["num_classes"]

    x = graph_emb.astype(jnp.bfloat16)

    # Pad batch to a multiple of 8 (sublane) and pick a batch tile.
    TB = 256
    Bp = ((B + 7) // 8) * 8
    if Bp > TB:
        Bp = ((B + TB - 1) // TB) * TB
    else:
        TB = Bp
    if Bp != B:
        x = jnp.zeros((Bp, D), jnp.bfloat16).at[:B, :].set(x)
    n_tiles = Bp // TB

    cost = pl.CostEstimate(
        flops=2 * Bp * (D * H1 + H1 * H2 + H2 * Cp),
        transcendentals=0,
        bytes_accessed=(x.size * 2 + w1.size * 2 + w2.size * 2 + w3.size * 2
                        + sh1.size * 4 + sh2.size * 4 + b3.size * 4
                        + Bp * Cp * 4),
    )

    out = pl.pallas_call(
        _clf_kernel,
        out_shape=jax.ShapeDtypeStruct((Bp, Cp), jnp.float32),
        grid=(n_tiles,),
        in_specs=[
            pl.BlockSpec((TB, D), lambda i: (i, 0)),
            pl.BlockSpec((D, H1), lambda i: (0, 0)),
            pl.BlockSpec((1, H1), lambda i: (0, 0)),
            pl.BlockSpec((H1, H2), lambda i: (0, 0)),
            pl.BlockSpec((1, H2), lambda i: (0, 0)),
            pl.BlockSpec((H2, Cp), lambda i: (0, 0)),
            pl.BlockSpec((1, Cp), lambda i: (0, 0)),
        ],
        out_specs=pl.BlockSpec((TB, Cp), lambda i: (i, 0)),
        compiler_params=pltpu.CompilerParams(
            dimension_semantics=("parallel",),
            vmem_limit_bytes=8 << 20,
        ),
        cost_estimate=cost,
    )(x, w1, sh1, w2, sh2, w3, b3)

    return out[:B, :C]


# ---------------------------------------------------------------------------
# Deterministic parameter init (mirrors _NonLinearClassifier.__init__ shapes)
# ---------------------------------------------------------------------------
def init_params(key, input_dim=128, num_classes=10):
    def kaiming_uniform(key, fan_in, fan_out):
        # torch.nn.init.kaiming_uniform_ (a=0, fan_in, gain=sqrt(2)):
        # bound = sqrt(6 / fan_in).  Stored as (in, out) = PyTorch weight.T.
        bound = math.sqrt(6.0 / fan_in)
        return jax.random.uniform(key, (fan_in, fan_out), jnp.float32,
                                  minval=-bound, maxval=bound)

    k1, k2, k3, k4 = jax.random.split(key, 4)
    params = {
        "w1": kaiming_uniform(k1, input_dim, 512),
        "bn1_gamma": jnp.ones((512,), jnp.float32),
        "bn1_beta": jnp.zeros((512,), jnp.float32),
        # Non-trivial running stats so the BN fold is actually exercised.
        "bn1_mean": 0.1 * jax.random.normal(k4, (512,), jnp.float32),
        "bn1_var": jnp.ones((512,), jnp.float32) * 1.5,
        "w2": kaiming_uniform(k2, 512, 256),
        "bn2_gamma": jnp.ones((256,), jnp.float32),
        "bn2_beta": jnp.zeros((256,), jnp.float32),
        "bn2_mean": jnp.zeros((256,), jnp.float32),
        "bn2_var": jnp.ones((256,), jnp.float32),
        "w3": kaiming_uniform(k3, 256, num_classes),
        "b3": jnp.zeros((num_classes,), jnp.float32),  # bias filled with 0.0
    }
    return params


# ---------------------------------------------------------------------------
# References
# ---------------------------------------------------------------------------
def reference_head_f32(x, params):
    """Pure-f32 reference of the original eval-mode forward (raw params)."""
    eps = 1e-5
    hp = jax.lax.Precision.HIGHEST
    h = jnp.dot(x, params["w1"], precision=hp)
    h = (h - params["bn1_mean"]) / jnp.sqrt(params["bn1_var"] + eps)
    h = h * params["bn1_gamma"] + params["bn1_beta"]
    h = jnp.maximum(h, 0.0)
    h = jnp.dot(h, params["w2"], precision=hp)
    h = (h - params["bn2_mean"]) / jnp.sqrt(params["bn2_var"] + eps)
    h = h * params["bn2_gamma"] + params["bn2_beta"]
    h = jnp.maximum(h, 0.0)
    return jnp.dot(h, params["w3"], precision=hp) + params["b3"]


def reference_head_prepared(x, prepped):
    """Mirrors the kernel's bf16 arithmetic (f32 accumulation) in plain JAX."""
    hp = jax.lax.Precision.HIGHEST
    xb = x.astype(jnp.bfloat16)
    h1 = jnp.dot(xb.astype(jnp.float32), prepped["w1"].astype(jnp.float32),
                 precision=hp) + prepped["sh1"]
    h1 = jnp.maximum(h1, 0.0).astype(jnp.bfloat16)
    h2 = jnp.dot(h1.astype(jnp.float32), prepped["w2"].astype(jnp.float32),
                 precision=hp) + prepped["sh2"]
    h2 = jnp.maximum(h2, 0.0).astype(jnp.bfloat16)
    out = jnp.dot(h2.astype(jnp.float32), prepped["w3"].astype(jnp.float32),
                  precision=hp) + prepped["b3"]
    return out[:, :prepped["num_classes"]]


if __name__ == "__main__":
    key = jax.random.PRNGKey(0)
    k_param, k_emb = jax.random.split(key)

    batch = 8            # number of solids in the batch
    graph_emb_dim = 128  # UVNetClassifier default graph_emb_dim
    num_classes = 10

    params = init_params(k_param, input_dim=graph_emb_dim,
                         num_classes=num_classes)
    prepped = prepare_params(params)  # one-time BN fold / bf16 / lane-padding

    # Synthetic graph embedding standing in for the (unspecified) encoders'
    # output: (batch_size, graph_emb_dim).
    graph_emb = jax.random.normal(k_emb, (batch, graph_emb_dim), jnp.float32)

    logits = uvnet_classifier_head(graph_emb, prepped)
    logits = jax.block_until_ready(logits)
    assert logits.shape == (batch, num_classes)

    # Tight check against the bf16-matched reference (validates the kernel).
    ref_bf16 = reference_head_prepared(graph_emb, prepped)
    assert jnp.allclose(logits, ref_bf16, atol=1e-2, rtol=1e-2), \
        "mismatch vs bf16-matched reference"

    # Loose check against the original f32 semantics (validates the BN fold
    # and bf16 quantization preserve the module's forward pass).
    ref_f32 = reference_head_f32(graph_emb, params)
    assert jnp.allclose(logits, ref_f32, atol=5e-2, rtol=5e-2), \
        "mismatch vs f32 reference"

    print("KERNEL_OK")
</pallas_src>

<mosaic_0001>
module attributes {stable_mosaic.version = 11 : i64} {
  func.func @_clf_kernel(%arg0: i32, %arg1: memref<8x128xbf16, #tpu.memory_space<vmem>>, %arg2: memref<128x512xbf16, #tpu.memory_space<vmem>>, %arg3: memref<1x512xf32, #tpu.memory_space<vmem>>, %arg4: memref<512x256xbf16, #tpu.memory_space<vmem>>, %arg5: memref<1x256xf32, #tpu.memory_space<vmem>>, %arg6: memref<256x128xbf16, #tpu.memory_space<vmem>>, %arg7: memref<1x128xf32, #tpu.memory_space<vmem>>, %arg8: memref<8x128xf32, #tpu.memory_space<vmem>>) attributes {dimension_semantics = [#tpu.dimension_semantics<parallel>], iteration_bounds = array<i64: 1>, scalar_prefetch = 0 : i64, scratch_operands = 0 : i64, tpu.core_type = #tpu.core_type<tc>, window_params = [{transform_indices = @transform_0, window_bounds = array<i64: 8, 128>}, {pipeline_mode = #tpu.pipeline_mode<synchronous>, transform_indices = @transform_1, window_bounds = array<i64: 128, 512>}, {pipeline_mode = #tpu.pipeline_mode<synchronous>, transform_indices = @transform_2, window_bounds = array<i64: 1, 512>}, {pipeline_mode = #tpu.pipeline_mode<synchronous>, transform_indices = @transform_3, window_bounds = array<i64: 512, 256>}, {pipeline_mode = #tpu.pipeline_mode<synchronous>, transform_indices = @transform_4, window_bounds = array<i64: 1, 256>}, {pipeline_mode = #tpu.pipeline_mode<synchronous>, transform_indices = @transform_5, window_bounds = array<i64: 256, 128>}, {pipeline_mode = #tpu.pipeline_mode<synchronous>, transform_indices = @transform_6, window_bounds = array<i64: 1, 128>}, {transform_indices = @transform_7, window_bounds = array<i64: 8, 128>}]} {
    %c0 = arith.constant 0 : index
    %c0_0 = arith.constant 0 : index
    %0 = vector.load %arg1[%c0, %c0_0] : memref<8x128xbf16, #tpu.memory_space<vmem>>, vector<8x128xbf16>
    %c0_1 = arith.constant 0 : index
    %c0_2 = arith.constant 0 : index
    %1 = vector.load %arg2[%c0_1, %c0_2] : memref<128x512xbf16, #tpu.memory_space<vmem>>, vector<128x512xbf16>
    %cst = arith.constant dense<0.000000e+00> : vector<8x512xf32>
    %2 = tpu.matmul %0, %1, %cst {dimension_numbers = #tpu.dot_dimension_numbers<[1], [0], [0], [1], [0, 0, 1, 1], [], []>} : vector<8x128xbf16>, vector<128x512xbf16>, vector<8x512xf32> -> vector<8x512xf32>
    %c0_3 = arith.constant 0 : index
    %c0_4 = arith.constant 0 : index
    %3 = vector.load %arg3[%c0_3, %c0_4] : memref<1x512xf32, #tpu.memory_space<vmem>>, vector<1x512xf32>
    %4 = vector.broadcast %3 : vector<1x512xf32> to vector<8x512xf32>
    %5 = arith.addf %2, %4 : vector<8x512xf32>
    %cst_5 = arith.constant 0.000000e+00 : f32
    %6 = vector.broadcast %cst_5 : f32 to vector<8x512xf32>
    %7 = arith.maximumf %5, %6 : vector<8x512xf32>
    %8 = arith.truncf %7 : vector<8x512xf32> to vector<8x512xbf16>
    %c0_6 = arith.constant 0 : index
    %c0_7 = arith.constant 0 : index
    %9 = vector.load %arg4[%c0_6, %c0_7] : memref<512x256xbf16, #tpu.memory_space<vmem>>, vector<512x256xbf16>
    %cst_8 = arith.constant dense<0.000000e+00> : vector<8x256xf32>
    %10 = tpu.matmul %8, %9, %cst_8 {dimension_numbers = #tpu.dot_dimension_numbers<[1], [0], [0], [1], [0, 0, 1, 1], [], []>} : vector<8x512xbf16>, vector<512x256xbf16>, vector<8x256xf32> -> vector<8x256xf32>
    %c0_9 = arith.constant 0 : index
    %c0_10 = arith.constant 0 : index
    %11 = vector.load %arg5[%c0_9, %c0_10] : memref<1x256xf32, #tpu.memory_space<vmem>>, vector<1x256xf32>
    %12 = vector.broadcast %11 : vector<1x256xf32> to vector<8x256xf32>
    %13 = arith.addf %10, %12 : vector<8x256xf32>
    %cst_11 = arith.constant 0.000000e+00 : f32
    %14 = vector.broadcast %cst_11 : f32 to vector<8x256xf32>
    %15 = arith.maximumf %13, %14 : vector<8x256xf32>
    %16 = arith.truncf %15 : vector<8x256xf32> to vector<8x256xbf16>
    %c0_12 = arith.constant 0 : index
    %c0_13 = arith.constant 0 : index
    %17 = vector.load %arg6[%c0_12, %c0_13] : memref<256x128xbf16, #tpu.memory_space<vmem>>, vector<256x128xbf16>
    %cst_14 = arith.constant dense<0.000000e+00> : vector<8x128xf32>
    %18 = tpu.matmul %16, %17, %cst_14 {dimension_numbers = #tpu.dot_dimension_numbers<[1], [0], [0], [1], [0, 0, 1, 1], [], []>} : vector<8x256xbf16>, vector<256x128xbf16>, vector<8x128xf32> -> vector<8x128xf32>
    %c0_15 = arith.constant 0 : index
    %c0_16 = arith.constant 0 : index
    %19 = vector.load %arg7[%c0_15, %c0_16] : memref<1x128xf32, #tpu.memory_space<vmem>>, vector<1x128xf32>
    %20 = vector.broadcast %19 : vector<1x128xf32> to vector<8x128xf32>
    %21 = arith.addf %18, %20 : vector<8x128xf32>
    %c0_17 = arith.constant 0 : index
    %c0_18 = arith.constant 0 : index
    %22 = vector.load %arg8[%c0_17, %c0_18] : memref<8x128xf32, #tpu.memory_space<vmem>>, vector<8x128xf32>
    tpu.vector_store %arg8[%c0_17, %c0_18], %21 {strides = array<i32>} : memref<8x128xf32, #tpu.memory_space<vmem>>, vector<8x128xf32>,
    return
  }
  func.func @transform_0(%arg0: i32) -> (i32, i32) {
    %c0_i32 = arith.constant 0 : i32
    %c0_i32_0 = arith.constant 0 : i32
    return %arg0, %c0_i32 : i32, i32
  }
  func.func @transform_1(%arg0: i32) -> (i32, i32) {
    %c0_i32 = arith.constant 0 : i32
    %c0_i32_0 = arith.constant 0 : i32
    %c0_i32_1 = arith.constant 0 : i32
    return %c0_i32, %c0_i32_0 : i32, i32
  }
  func.func @transform_2(%arg0: i32) -> (i32, i32) {
    %c0_i32 = arith.constant 0 : i32
    %c0_i32_0 = arith.constant 0 : i32
    %c0_i32_1 = arith.constant 0 : i32
    return %c0_i32, %c0_i32_0 : i32, i32
  }
  func.func @transform_3(%arg0: i32) -> (i32, i32) {
    %c0_i32 = arith.constant 0 : i32
    %c0_i32_0 = arith.constant 0 : i32
    %c0_i32_1 = arith.constant 0 : i32
    return %c0_i32, %c0_i32_0 : i32, i32
  }
  func.func @transform_4(%arg0: i32) -> (i32, i32) {
    %c0_i32 = arith.constant 0 : i32
    %c0_i32_0 = arith.constant 0 : i32
    %c0_i32_1 = arith.constant 0 : i32
    return %c0_i32, %c0_i32_0 : i32, i32
  }
  func.func @transform_5(%arg0: i32) -> (i32, i32) {
    %c0_i32 = arith.constant 0 : i32
    %c0_i32_0 = arith.constant 0 : i32
    %c0_i32_1 = arith.constant 0 : i32
    return %c0_i32, %c0_i32_0 : i32, i32
  }
  func.func @transform_6(%arg0: i32) -> (i32, i32) {
    %c0_i32 = arith.constant 0 : i32
    %c0_i32_0 = arith.constant 0 : i32
    %c0_i32_1 = arith.constant 0 : i32
    return %c0_i32, %c0_i32_0 : i32, i32
  }
  func.func @transform_7(%arg0: i32) -> (i32, i32) {
    %c0_i32 = arith.constant 0 : i32
    %c0_i32_0 = arith.constant 0 : i32
    return %arg0, %c0_i32 : i32, i32
  }
}

</mosaic_0001>

<llo_original>
// kernel: tpu_custom_call.1
$region0: #{tpu_custom_call.1}
  #allocation0 [shape = 'u32[]', space=smem, size = 0x4, offset = 0x4, fixed_abs, tag = 'smem constant byte address 0x4 - core index']
  #allocation1 [shape = 'u32[72,128]{1,0:T(1,128)}', space=vmem, size = 0x9000, scoped, tag = 'internal scratch']
  %s0 = inlined_call_operand.hbm [shape: bf16[8,128], index: 0, kind: input, shape index: {}]
  %s1 = inlined_call_operand.hbm [shape: bf16[128,512], index: 1, kind: input, shape index: {}]
  %s2 = inlined_call_operand.hbm [shape: f32[1,512], index: 2, kind: input, shape index: {}]
  %s3 = inlined_call_operand.hbm [shape: bf16[512,256], index: 3, kind: input, shape index: {}]
  %s4 = inlined_call_operand.vmem [shape: f32[1,256], index: 4, kind: input, shape index: {}]
  %s5 = inlined_call_operand.hbm [shape: bf16[256,128], index: 5, kind: input, shape index: {}]
  %s6 = inlined_call_operand.vmem [shape: f32[1,128], index: 6, kind: input, shape index: {}]
  %s7 = inlined_call_operand.hbm [shape: f32[8,128], index: 7, kind: output, shape index: {}]
  %s8 = sld [smem:[#allocation0]]
  $region58: #{tpu_custom_call.1} parent=0
    _
  %s10 = ssub.s32 1, %s8
  %s11 = scalar_select 0, %s10, %s8
  $region1: #{tpu_custom_call.1} parent=0
    #allocation2 [shape = 'u8[2048]{0}', space=vmem, size = 0x800, scoped, tag = 'input window, operand 0, single buffered']
    #allocation3 [shape = 's32[1]{0}', space=sflag, size = 0x4, scoped, tag = 'scoped memory for tpu_custom_call.1']
    #allocation4 [shape = 's32[1]{0}', space=sflag, size = 0x4, scoped, tag = 'scoped memory for tpu_custom_call.1']
    #allocation5 [shape = 'u8[131072]{0}', space=vmem, size = 0x20000, scoped, tag = 'input window, operand 1, single buffered']
    #allocation6 [shape = 's32[1]{0}', space=sflag, size = 0x4, scoped, tag = 'scoped memory for tpu_custom_call.1']
    #allocation7 [shape = 'u8[2048]{0}', space=vmem, size = 0x800, scoped, tag = 'input window, operand 2, single buffered']
    #allocation8 [shape = 'u8[262144]{0}', space=vmem, size = 0x40000, scoped, tag = 'input window, operand 3, single buffered']
    #allocation9 [shape = 's32[1]{0}', space=sflag, size = 0x4, scoped, tag = 'scoped memory for tpu_custom_call.1']
    #allocation10 [shape = 'u8[65536]{0}', space=vmem, size = 0x10000, scoped, tag = 'input window, operand 5, single buffered']
    #allocation11 [shape = 'u8[4096]{0}', space=vmem, size = 0x1000, scoped, tag = 'output window, operand 0, single buffered']
    %12 = vsyncpa [#allocation3], 0
    %13 = vsyncpa [#allocation6], 0
    %14 = vsyncpa [#allocation9], 0
    %15 = vsyncpa [#allocation4], 0
    // Predicated region
    $region2: #{tpu_custom_call.1} parent=1 // pred_check
      _
    $region3: #{tpu_custom_call.1} parent=1 // pred_check_branch
      %17 = sbr.rel (0) target = $region5
    $region4: #{tpu_custom_call.1} parent=1 // pred_region
      %19 = vsyncadd [#allocation3], 0
      %s21 = sshll.u32 %s0, 4
      %s22 = int_to_ptr.hbm [resolvable:$true] %s21
      %s23 = sshll.u32 [#allocation2], 4
      %s24 = int_to_ptr.vmem [resolvable:$true] %s23
      %26 = dma.hbm_to_vmem [thread:$0]  %s22, 64, %s24, [#allocation3]
    $region5: #{tpu_custom_call.1} parent=1 // pred_fallthru
      _
    // Predicated region
    $region6: #{tpu_custom_call.1} parent=1 // pred_check
      _
    $region7: #{tpu_custom_call.1} parent=1 // pred_check_branch
      %28 = sbr.rel (0) target = $region9
    $region8: #{tpu_custom_call.1} parent=1 // pred_region
      %30 = vsyncadd [#allocation6], 0
      %s31 = sshll.u32 %s1, 4
      %s32 = int_to_ptr.hbm [resolvable:$true] %s31
      %s33 = sshll.u32 [#allocation5], 4
      %s34 = int_to_ptr.vmem [resolvable:$true] %s33
      %39 = dma.hbm_to_vmem [thread:$0]  %s32, 4096, %s34, [#allocation6], 256, 256, 16
    $region9: #{tpu_custom_call.1} parent=1 // pred_fallthru
      _
    // Predicated region
    $region10: #{tpu_custom_call.1} parent=1 // pred_check
      _
    $region11: #{tpu_custom_call.1} parent=1 // pred_check_branch
      %41 = sbr.rel (0) target = $region13
    $region12: #{tpu_custom_call.1} parent=1 // pred_region
      %43 = vsyncadd [#allocation6], 0
      %s45 = sshll.u32 %s2, 4
      %s46 = int_to_ptr.hbm [resolvable:$true] %s45
      %s47 = sshll.u32 [#allocation7], 4
      %s48 = int_to_ptr.vmem [resolvable:$true] %s47
      %50 = dma.hbm_to_vmem [thread:$0]  %s46, 64, %s48, [#allocation6]
    $region13: #{tpu_custom_call.1} parent=1 // pred_fallthru
      _
    // Predicated region
    $region14: #{tpu_custom_call.1} parent=1 // pred_check
      _
    $region15: #{tpu_custom_call.1} parent=1 // pred_check_branch
      %52 = sbr.rel (0) target = $region17
    $region16: #{tpu_custom_call.1} parent=1 // pred_region
      %54 = vsyncadd [#allocation9], 0
      %s55 = sshll.u32 %s3, 4
      %s56 = int_to_ptr.hbm [resolvable:$true] %s55
      %s57 = sshll.u32 [#allocation8], 4
      %s58 = int_to_ptr.vmem [resolvable:$true] %s57
      %63 = dma.hbm_to_vmem [thread:$0]  %s56, 8192, %s58, [#allocation9], 128, 128, 8
    $region17: #{tpu_custom_call.1} parent=1 // pred_fallthru
      _
    // Predicated region
    $region18: #{tpu_custom_call.1} parent=1 // pred_check
      _
    $region19: #{tpu_custom_call.1} parent=1 // pred_check_branch
      %65 = sbr.rel (0) target = $region21
    $region20: #{tpu_custom_call.1} parent=1 // pred_region
      _
    $region21: #{tpu_custom_call.1} parent=1 // pred_fallthru
      _
    // Predicated region
    $region22: #{tpu_custom_call.1} parent=1 // pred_check
      _
    $region23: #{tpu_custom_call.1} parent=1 // pred_check_branch
      %67 = sbr.rel (0) target = $region25
    $region24: #{tpu_custom_call.1} parent=1 // pred_region
      %69 = vsyncadd [#allocation9], 0
      %s70 = sshll.u32 %s5, 4
      %s71 = int_to_ptr.hbm [resolvable:$true] %s70
      %s72 = sshll.u32 [#allocation10], 4
      %s73 = int_to_ptr.vmem [resolvable:$true] %s72
      %78 = dma.hbm_to_vmem [thread:$0]  %s71, 2048, %s73, [#allocation9], 64, 64, 4
    $region25: #{tpu_custom_call.1} parent=1 // pred_fallthru
      _
    // Predicated region
    $region26: #{tpu_custom_call.1} parent=1 // pred_check
      _
    $region27: #{tpu_custom_call.1} parent=1 // pred_check_branch
      %80 = sbr.rel (0) target = $region29
    $region28: #{tpu_custom_call.1} parent=1 // pred_region
      _
    $region29: #{tpu_custom_call.1} parent=1 // pred_fallthru
      _
    // Predicated region
    $region30: #{tpu_custom_call.1} parent=1 // pred_check
      _
    $region31: #{tpu_custom_call.1} parent=1 // pred_check_branch
      %82 = sbr.rel (0) target = $region33
    $region32: #{tpu_custom_call.1} parent=1 // pred_region
      %84 = dma.done [#allocation3], 64
    $region33: #{tpu_custom_call.1} parent=1 // pred_fallthru
      _
    // Predicated region
    $region34: #{tpu_custom_call.1} parent=1 // pred_check
      _
    $region35: #{tpu_custom_call.1} parent=1 // pred_check_branch
      %86 = sbr.rel (0) target = $region37
    $region36: #{tpu_custom_call.1} parent=1 // pred_region
      %88 = dma.done [#allocation6], 4096
    $region37: #{tpu_custom_call.1} parent=1 // pred_fallthru
      _
    // Predicated region
    $region38: #{tpu_custom_call.1} parent=1 // pred_check
      _
    $region39: #{tpu_custom_call.1} parent=1 // pred_check_branch
      %90 = sbr.rel (0) target = $region41
    $region40: #{tpu_custom_call.1} parent=1 // pred_region
      %92 = dma.done [#allocation6], 64
    $region41: #{tpu_custom_call.1} parent=1 // pred_fallthru
      _
    // Predicated region
    $region42: #{tpu_custom_call.1} parent=1 // pred_check
      _
    $region43: #{tpu_custom_call.1} parent=1 // pred_check_branch
      %94 = sbr.rel (0) target = $region45
    $region44: #{tpu_custom_call.1} parent=1 // pred_region
      %96 = dma.done [#allocation9], 8192
    $region45: #{tpu_custom_call.1} parent=1 // pred_fallthru
      _
    // Predicated region
    $region46: #{tpu_custom_call.1} parent=1 // pred_check
      _
    $region47: #{tpu_custom_call.1} parent=1 // pred_check_branch
      %98 = sbr.rel (0) target = $region49
    $region48: #{tpu_custom_call.1} parent=1 // pred_region
      %100 = dma.done [#allocation9], 2048
    $region49: #{tpu_custom_call.1} parent=1 // pred_fallthru
      _
    %v101 = vld [vmem:[#allocation2] sm:$0xf]
    %v102 = vld [vmem:[#allocation5] sm:$0xff]
    %v103 = vld [vmem:[#allocation5 + $0x8] sm:$0xff]
    %v104 = vld [vmem:[#allocation5 + $0x10] sm:$0xff]
    %v105 = vld [vmem:[#allocation5 + $0x18] sm:$0xff]
    %v106 = vld [vmem:[#allocation5 + $0x20] sm:$0xff]
    %v107 = vld [vmem:[#allocation5 + $0x28] sm:$0xff]
    %v108 = vld [vmem:[#allocation5 + $0x30] sm:$0xff]
    %v109 = vld [vmem:[#allocation5 + $0x38] sm:$0xff]
    %v110 = vld [vmem:[#allocation5 + $0x40] sm:$0xff]
    %v111 = vld [vmem:[#allocation5 + $0x48] sm:$0xff]
    %v112 = vld [vmem:[#allocation5 + $0x50] sm:$0xff]
    %v113 = vld [vmem:[#allocation5 + $0x58] sm:$0xff]
    %v114 = vld [vmem:[#allocation5 + $0x60] sm:$0xff]
    %v115 = vld [vmem:[#allocation5 + $0x68] sm:$0xff]
    %v116 = vld [vmem:[#allocation5 + $0x70] sm:$0xff]
    %v117 = vld [vmem:[#allocation5 + $0x78] sm:$0xff]
    %v118 = vld [vmem:[#allocation5 + $0x80] sm:$0xff]
    %v119 = vld [vmem:[#allocation5 + $0x88] sm:$0xff]
    %v120 = vld [vmem:[#allocation5 + $0x90] sm:$0xff]
    %v121 = vld [vmem:[#allocation5 + $0x98] sm:$0xff]
    %v122 = vld [vmem:[#allocation5 + $0xa0] sm:$0xff]
    %v123 = vld [vmem:[#allocation5 + $0xa8] sm:$0xff]
    %v124 = vld [vmem:[#allocation5 + $0xb0] sm:$0xff]
    %v125 = vld [vmem:[#allocation5 + $0xb8] sm:$0xff]
    %v126 = vld [vmem:[#allocation5 + $0xc0] sm:$0xff]
    %v127 = vld [vmem:[#allocation5 + $0xc8] sm:$0xff]
    %v128 = vld [vmem:[#allocation5 + $0xd0] sm:$0xff]
    %v129 = vld [vmem:[#allocation5 + $0xd8] sm:$0xff]
    %v130 = vld [vmem:[#allocation5 + $0xe0] sm:$0xff]
    %v131 = vld [vmem:[#allocation5 + $0xe8] sm:$0xff]
    %v132 = vld [vmem:[#allocation5 + $0xf0] sm:$0xff]
    %v133 = vld [vmem:[#allocation5 + $0xf8] sm:$0xff]
    %v134 = vld [vmem:[#allocation7] sm:$0xf]
    %v136 = vperm.slane %v134, 0
    %v137 = vperm.slane %v134, 1
    %v138 = vperm.slane %v134, 2
    %v139 = vperm.slane %v134, 3
    %v176 = vunpack.c.l.b16 %v102
    %v177 = vunpack.c.h.b16 %v102
    %v178 = vunpack.c.l.b16 %v103
    %v179 = vunpack.c.h.b16 %v103
    %v180 = vunpack.c.l.b16 %v104
    %v181 = vunpack.c.h.b16 %v104
    %v182 = vunpack.c.l.b16 %v105
    %v183 = vunpack.c.h.b16 %v105
    %v184 = vunpack.c.l.b16 %v106
    %v185 = vunpack.c.h.b16 %v106
    %v186 = vunpack.c.l.b16 %v107
    %v187 = vunpack.c.h.b16 %v107
    %v188 = vunpack.c.l.b16 %v108
    %v189 = vunpack.c.h.b16 %v108
    %v190 = vunpack.c.l.b16 %v109
    %v191 = vunpack.c.h.b16 %v109
    %v192 = vunpack.c.l.b16 %v110
    %v193 = vunpack.c.h.b16 %v110
    %v194 = vunpack.c.l.b16 %v111
    %v195 = vunpack.c.h.b16 %v111
    %v196 = vunpack.c.l.b16 %v112
    %v197 = vunpack.c.h.b16 %v112
    %v198 = vunpack.c.l.b16 %v113
    %v199 = vunpack.c.h.b16 %v113
    %v200 = vunpack.c.l.b16 %v114
    %v201 = vunpack.c.h.b16 %v114
    %v202 = vunpack.c.l.b16 %v115
    %v203 = vunpack.c.h.b16 %v115
    %v204 = vunpack.c.l.b16 %v116
    %v205 = vunpack.c.h.b16 %v116
    %v206 = vunpack.c.l.b16 %v117
    %v207 = vunpack.c.h.b16 %v117
    %v208 = vunpack.c.l.b16 %v118
    %v209 = vunpack.c.h.b16 %v118
    %v210 = vunpack.c.l.b16 %v119
    %v211 = vunpack.c.h.b16 %v119
    %v212 = vunpack.c.l.b16 %v120
    %v213 = vunpack.c.h.b16 %v120
    %v214 = vunpack.c.l.b16 %v121
    %v215 = vunpack.c.h.b16 %v121
    %v216 = vunpack.c.l.b16 %v122
    %v217 = vunpack.c.h.b16 %v122
    %v218 = vunpack.c.l.b16 %v123
    %v219 = vunpack.c.h.b16 %v123
    %v220 = vunpack.c.l.b16 %v124
    %v221 = vunpack.c.h.b16 %v124
    %v222 = vunpack.c.l.b16 %v125
    %v223 = vunpack.c.h.b16 %v125
    %v224 = vunpack.c.l.b16 %v126
    %v225 = vunpack.c.h.b16 %v126
    %v226 = vunpack.c.l.b16 %v127
    %v227 = vunpack.c.h.b16 %v127
    %v228 = vunpack.c.l.b16 %v128
    %v229 = vunpack.c.h.b16 %v128
    %v230 = vunpack.c.l.b16 %v129
    %v231 = vunpack.c.h.b16 %v129
    %v232 = vunpack.c.l.b16 %v130
    %v233 = vunpack.c.h.b16 %v130
    %v234 = vunpack.c.l.b16 %v131
    %v235 = vunpack.c.h.b16 %v131
    %v236 = vunpack.c.l.b16 %v132
    %v237 = vunpack.c.h.b16 %v132
    %v238 = vunpack.c.l.b16 %v133
    %v239 = vunpack.c.h.b16 %v133
    %v240 = vpack.c.b16 %v180, %v176
    %v241 = vpack.c.b16 %v181, %v177
    %v242 = vpack.c.b16 %v182, %v178
    %v243 = vpack.c.b16 %v183, %v179
    %v244 = vpack.c.b16 %v188, %v184
    %v245 = vpack.c.b16 %v189, %v185
    %v246 = vpack.c.b16 %v190, %v186
    %v247 = vpack.c.b16 %v191, %v187
    %v248 = vpack.c.b16 %v196, %v192
    %v249 = vpack.c.b16 %v197, %v193
    %v250 = vpack.c.b16 %v198, %v194
    %v251 = vpack.c.b16 %v199, %v195
    %v252 = vpack.c.b16 %v204, %v200
    %v253 = vpack.c.b16 %v205, %v201
    %v254 = vpack.c.b16 %v206, %v202
    %v255 = vpack.c.b16 %v207, %v203
    %v256 = vpack.c.b16 %v212, %v208
    %v257 = vpack.c.b16 %v213, %v209
    %v258 = vpack.c.b16 %v214, %v210
    %v259 = vpack.c.b16 %v215, %v211
    %v260 = vpack.c.b16 %v220, %v216
    %v261 = vpack.c.b16 %v221, %v217
    %v262 = vpack.c.b16 %v222, %v218
    %v263 = vpack.c.b16 %v223, %v219
    %v264 = vpack.c.b16 %v228, %v224
    %v265 = vpack.c.b16 %v229, %v225
    %v266 = vpack.c.b16 %v230, %v226
    %v267 = vpack.c.b16 %v231, %v227
    %v268 = vpack.c.b16 %v236, %v232
    %v269 = vpack.c.b16 %v237, %v233
    %v270 = vpack.c.b16 %v238, %v234
    %v271 = vpack.c.b16 %v239, %v235
    %304 = vmatpush.bf16.msra.mxu0 %v268
    %305 = vmatpush.bf16.msra.mxu0 %v264
    %306 = vmatpush.bf16.msra.mxu0 %v260
    %307 = vmatpush.bf16.msra.mxu0 %v256
    %308 = vmatpush.bf16.msra.mxu0 %v252
    %309 = vmatpush.bf16.msra.mxu0 %v248
    %310 = vmatpush.bf16.msra.mxu0 %v244
    %311 = vmatpush.bf16.msra.mxu0 %v240
    %312 = vmatmul.bf16.gmra.mxu0 %v101
    %v313 = vpop.f32.mrf.mxu0
    %v314 = vadd.f32 %v136, %v313
    %v315 = vpop.f32.mrf.mxu0
    %316 = vdwg.mxu0
    %317 = vmatpush.bf16.msra.mxu0 %v269
    %318 = vmatpush.bf16.msra.mxu0 %v265
    %319 = vmatpush.bf16.msra.mxu0 %v261
    %320 = vmatpush.bf16.msra.mxu0 %v257
    %321 = vmatpush.bf16.msra.mxu0 %v253
    %322 = vmatpush.bf16.msra.mxu0 %v249
    %323 = vmatpush.bf16.msra.mxu0 %v245
    %324 = vmatpush.bf16.msra.mxu0 %v241
    %325 = vmatmul.bf16.gmra.mxu0 %v101
    %v326 = vpop.f32.mrf.mxu0
    %v327 = vadd.f32 %v137, %v326
    %v328 = vpop.f32.mrf.mxu0
    %329 = vdwg.mxu0
    %330 = vmatpush.bf16.msra.mxu0 %v270
    %331 = vmatpush.bf16.msra.mxu0 %v266
    %332 = vmatpush.bf16.msra.mxu0 %v262
    %333 = vmatpush.bf16.msra.mxu0 %v258
    %334 = vmatpush.bf16.msra.mxu0 %v254
    %335 = vmatpush.bf16.msra.mxu0 %v250
    %336 = vmatpush.bf16.msra.mxu0 %v246
    %337 = vmatpush.bf16.msra.mxu0 %v242
    %338 = vmatmul.bf16.gmra.mxu0 %v101
    %v339 = vpop.f32.mrf.mxu0
    %v340 = vadd.f32 %v138, %v339
    %v341 = vpop.f32.mrf.mxu0
    %342 = vdwg.mxu0
    %343 = vmatpush.bf16.msra.mxu0 %v271
    %344 = vmatpush.bf16.msra.mxu0 %v267
    %345 = vmatpush.bf16.msra.mxu0 %v263
    %346 = vmatpush.bf16.msra.mxu0 %v259
    %347 = vmatpush.bf16.msra.mxu0 %v255
    %348 = vmatpush.bf16.msra.mxu0 %v251
    %349 = vmatpush.bf16.msra.mxu0 %v247
    %350 = vmatpush.bf16.msra.mxu0 %v243
    %351 = vmatmul.bf16.gmra.mxu0 %v101
    %v352 = vpop.f32.mrf.mxu0
    %v353 = vadd.f32 %v139, %v352
    %v354 = vpop.f32.mrf.mxu0
    %355 = vdwg.mxu0
    %v356 = vmax.f32 %v314, 0.0
    %v357 = vmax.f32 %v327, 0.0
    %v358 = vmax.f32 %v340, 0.0
    %v359 = vmax.f32 %v353, 0.0
    %v360 = vpack.c.bf16 %v356, %v356
    %v361 = vpack.c.bf16 %v357, %v357
    %v362 = vpack.c.bf16 %v358, %v358
    %v363 = vpack.c.bf16 %v359, %v359
    %v364 = vld [vmem:[#allocation8] sm:$0xff]
    %v365 = vld [vmem:[#allocation8 + $0x8] sm:$0xff]
    %v366 = vld [vmem:[#allocation8 + $0x10] sm:$0xff]
    %v367 = vld [vmem:[#allocation8 + $0x18] sm:$0xff]
    %v368 = vld [vmem:[#allocation8 + $0x20] sm:$0xff]
    %v369 = vld [vmem:[#allocation8 + $0x28] sm:$0xff]
    %v370 = vld [vmem:[#allocation8 + $0x30] sm:$0xff]
    %v371 = vld [vmem:[#allocation8 + $0x38] sm:$0xff]
    %v372 = vld [vmem:[#allocation8 + $0x40] sm:$0xff]
    %v373 = vld [vmem:[#allocation8 + $0x48] sm:$0xff]
    %v374 = vld [vmem:[#allocation8 + $0x50] sm:$0xff]
    %v375 = vld [vmem:[#allocation8 + $0x58] sm:$0xff]
    %v376 = vld [vmem:[#allocation8 + $0x60] sm:$0xff]
    %v377 = vld [vmem:[#allocation8 + $0x68] sm:$0xff]
    %v378 = vld [vmem:[#allocation8 + $0x70] sm:$0xff]
    %v379 = vld [vmem:[#allocation8 + $0x78] sm:$0xff]
    %v380 = vld [vmem:[#allocation8 + $0x80] sm:$0xff]
    %v381 = vld [vmem:[#allocation8 + $0x88] sm:$0xff]
    %v382 = vld [vmem:[#allocation8 + $0x90] sm:$0xff]
    %v383 = vld [vmem:[#allocation8 + $0x98] sm:$0xff]
    %v384 = vld [vmem:[#allocation8 + $0xa0] sm:$0xff]
    %v385 = vld [vmem:[#allocation8 + $0xa8] sm:$0xff]
    %v386 = vld [vmem:[#allocation8 + $0xb0] sm:$0xff]
    %v387 = vld [vmem:[#allocation8 + $0xb8] sm:$0xff]
    %v388 = vld [vmem:[#allocation8 + $0xc0] sm:$0xff]
    %v389 = vld [vmem:[#allocation8 + $0xc8] sm:$0xff]
    %v390 = vld [vmem:[#allocation8 + $0xd0] sm:$0xff]
    %v391 = vld [vmem:[#allocation8 + $0xd8] sm:$0xff]
    %v392 = vld [vmem:[#allocation8 + $0xe0] sm:$0xff]
    %v393 = vld [vmem:[#allocation8 + $0xe8] sm:$0xff]
    %v394 = vld [vmem:[#allocation8 + $0xf0] sm:$0xff]
    %v395 = vld [vmem:[#allocation8 + $0xf8] sm:$0xff]
    %v396 = vld [vmem:[#allocation8 + $0x100] sm:$0xff]
    %v397 = vld [vmem:[#allocation8 + $0x108] sm:$0xff]
    %v398 = vld [vmem:[#allocation8 + $0x110] sm:$0xff]
    %v399 = vld [vmem:[#allocation8 + $0x118] sm:$0xff]
    %v400 = vld [vmem:[#allocation8 + $0x120] sm:$0xff]
    %v401 = vld [vmem:[#allocation8 + $0x128] sm:$0xff]
    %v402 = vld [vmem:[#allocation8 + $0x130] sm:$0xff]
    %v403 = vld [vmem:[#allocation8 + $0x138] sm:$0xff]
    %v404 = vld [vmem:[#allocation8 + $0x140] sm:$0xff]
    %v405 = vld [vmem:[#allocation8 + $0x148] sm:$0xff]
    %v406 = vld [vmem:[#allocation8 + $0x150] sm:$0xff]
    %v407 = vld [vmem:[#allocation8 + $0x158] sm:$0xff]
    %v408 = vld [vmem:[#allocation8 + $0x160] sm:$0xff]
    %v409 = vld [vmem:[#allocation8 + $0x168] sm:$0xff]
    %v410 = vld [vmem:[#allocation8 + $0x170] sm:$0xff]
    %v411 = vld [vmem:[#allocation8 + $0x178] sm:$0xff]
    %v412 = vld [vmem:[#allocation8 + $0x180] sm:$0xff]
    %v413 = vld [vmem:[#allocation8 + $0x188] sm:$0xff]
    %v414 = vld [vmem:[#allocation8 + $0x190] sm:$0xff]
    %v415 = vld [vmem:[#allocation8 + $0x198] sm:$0xff]
    %v416 = vld [vmem:[#allocation8 + $0x1a0] sm:$0xff]
    %v417 = vld [vmem:[#allocation8 + $0x1a8] sm:$0xff]
    %v418 = vld [vmem:[#allocation8 + $0x1b0] sm:$0xff]
    %v419 = vld [vmem:[#allocation8 + $0x1b8] sm:$0xff]
    %v420 = vld [vmem:[#allocation8 + $0x1c0] sm:$0xff]
    %v421 = vld [vmem:[#allocation8 + $0x1c8] sm:$0xff]
    %v422 = vld [vmem:[#allocation8 + $0x1d0] sm:$0xff]
    %v423 = vld [vmem:[#allocation8 + $0x1d8] sm:$0xff]
    %v424 = vld [vmem:[#allocation8 + $0x1e0] sm:$0xff]
    %v425 = vld [vmem:[#allocation8 + $0x1e8] sm:$0xff]
    %v426 = vld [vmem:[#allocation8 + $0x1f0] sm:$0xff]
    %v427 = vld [vmem:[#allocation8 + $0x1f8] sm:$0xff]
    %v428 = vld [vmem:[%s4] sm:$0x3]
    %v430 = vperm.slane %v428, 0
    %v431 = vperm.slane %v428, 1
    %v498 = vunpack.c.l.b16 %v364
    %v499 = vunpack.c.h.b16 %v364
    %v500 = vunpack.c.l.b16 %v365
    %v501 = vunpack.c.h.b16 %v365
    %v502 = vunpack.c.l.b16 %v366
    %v503 = vunpack.c.h.b16 %v366
    %v504 = vunpack.c.l.b16 %v367
    %v505 = vunpack.c.h.b16 %v367
    %v506 = vunpack.c.l.b16 %v368
    %v507 = vunpack.c.h.b16 %v368
    %v508 = vunpack.c.l.b16 %v369
    %v509 = vunpack.c.h.b16 %v369
    %v510 = vunpack.c.l.b16 %v370
    %v511 = vunpack.c.h.b16 %v370
    %v512 = vunpack.c.l.b16 %v371
    %v513 = vunpack.c.h.b16 %v371
    %v514 = vunpack.c.l.b16 %v372
    %v515 = vunpack.c.h.b16 %v372
    %v516 = vunpack.c.l.b16 %v373
    %v517 = vunpack.c.h.b16 %v373
    %v518 = vunpack.c.l.b16 %v374
    %v519 = vunpack.c.h.b16 %v374
    %v520 = vunpack.c.l.b16 %v375
    %v521 = vunpack.c.h.b16 %v375
    %v522 = vunpack.c.l.b16 %v376
    %v523 = vunpack.c.h.b16 %v376
    %v524 = vunpack.c.l.b16 %v377
    %v525 = vunpack.c.h.b16 %v377
    %v526 = vunpack.c.l.b16 %v378
    %v527 = vunpack.c.h.b16 %v378
    %v528 = vunpack.c.l.b16 %v379
    %v529 = vunpack.c.h.b16 %v379
    %v530 = vunpack.c.l.b16 %v380
    %v531 = vunpack.c.h.b16 %v380
    %v532 = vunpack.c.l.b16 %v381
    %v533 = vunpack.c.h.b16 %v381
    %v534 = vunpack.c.l.b16 %v382
    %v535 = vunpack.c.h.b16 %v382
    %v536 = vunpack.c.l.b16 %v383
    %v537 = vunpack.c.h.b16 %v383
    %v538 = vunpack.c.l.b16 %v384
    %v539 = vunpack.c.h.b16 %v384
    %v540 = vunpack.c.l.b16 %v385
    %v541 = vunpack.c.h.b16 %v385
    %v542 = vunpack.c.l.b16 %v386
    %v543 = vunpack.c.h.b16 %v386
    %v544 = vunpack.c.l.b16 %v387
    %v545 = vunpack.c.h.b16 %v387
    %v546 = vunpack.c.l.b16 %v388
    %v547 = vunpack.c.h.b16 %v388
    %v548 = vunpack.c.l.b16 %v389
    %v549 = vunpack.c.h.b16 %v389
    %v550 = vunpack.c.l.b16 %v390
    %v551 = vunpack.c.h.b16 %v390
    %v552 = vunpack.c.l.b16 %v391
    %v553 = vunpack.c.h.b16 %v391
    %v554 = vunpack.c.l.b16 %v392
    %v555 = vunpack.c.h.b16 %v392
    %v556 = vunpack.c.l.b16 %v393
    %v557 = vunpack.c.h.b16 %v393
    %v558 = vunpack.c.l.b16 %v394
    %v559 = vunpack.c.h.b16 %v394
    %v560 = vunpack.c.l.b16 %v395
    %v561 = vunpack.c.h.b16 %v395
    %v562 = vunpack.c.l.b16 %v396
    %v563 = vunpack.c.h.b16 %v396
    %v564 = vunpack.c.l.b16 %v397
    %v565 = vunpack.c.h.b16 %v397
    %v566 = vunpack.c.l.b16 %v398
    %v567 = vunpack.c.h.b16 %v398
    %v568 = vunpack.c.l.b16 %v399
    %v569 = vunpack.c.h.b16 %v399
    %v570 = vunpack.c.l.b16 %v400
    %v571 = vunpack.c.h.b16 %v400
    %v572 = vunpack.c.l.b16 %v401
    %v573 = vunpack.c.h.b16 %v401
    %v574 = vunpack.c.l.b16 %v402
    %v575 = vunpack.c.h.b16 %v402
    %v576 = vunpack.c.l.b16 %v403
    %v577 = vunpack.c.h.b16 %v403
    %v578 = vunpack.c.l.b16 %v404
    %v579 = vunpack.c.h.b16 %v404
    %v580 = vunpack.c.l.b16 %v405
    %v581 = vunpack.c.h.b16 %v405
    %v582 = vunpack.c.l.b16 %v406
    %v583 = vunpack.c.h.b16 %v406
    %v584 = vunpack.c.l.b16 %v407
    %v585 = vunpack.c.h.b16 %v407
    %v586 = vunpack.c.l.b16 %v408
    %v587 = vunpack.c.h.b16 %v408
    %v588 = vunpack.c.l.b16 %v409
    %v589 = vunpack.c.h.b16 %v409
    %v590 = vunpack.c.l.b16 %v410
    %v591 = vunpack.c.h.b16 %v410
    %v592 = vunpack.c.l.b16 %v411
    %v593 = vunpack.c.h.b16 %v411
    %v594 = vunpack.c.l.b16 %v412
    %v595 = vunpack.c.h.b16 %v412
    %v596 = vunpack.c.l.b16 %v413
    %v597 = vunpack.c.h.b16 %v413
    %v598 = vunpack.c.l.b16 %v414
    %v599 = vunpack.c.h.b16 %v414
    %v600 = vunpack.c.l.b16 %v415
    %v601 = vunpack.c.h.b16 %v415
    %v602 = vunpack.c.l.b16 %v416
    %v603 = vunpack.c.h.b16 %v416
    %v604 = vunpack.c.l.b16 %v417
    %v605 = vunpack.c.h.b16 %v417
    %v606 = vunpack.c.l.b16 %v418
    %v607 = vunpack.c.h.b16 %v418
    %v608 = vunpack.c.l.b16 %v419
    %v609 = vunpack.c.h.b16 %v419
    %v610 = vunpack.c.l.b16 %v420
    %v611 = vunpack.c.h.b16 %v420
    %v612 = vunpack.c.l.b16 %v421
    %v613 = vunpack.c.h.b16 %v421
    %v614 = vunpack.c.l.b16 %v422
    %v615 = vunpack.c.h.b16 %v422
    %v616 = vunpack.c.l.b16 %v423
    %v617 = vunpack.c.h.b16 %v423
    %v618 = vunpack.c.l.b16 %v424
    %v619 = vunpack.c.h.b16 %v424
    %v620 = vunpack.c.l.b16 %v425
    %v621 = vunpack.c.h.b16 %v425
    %v622 = vunpack.c.l.b16 %v426
    %v623 = vunpack.c.h.b16 %v426
    %v624 = vunpack.c.l.b16 %v427
    %v625 = vunpack.c.h.b16 %v427
    %v626 = vpack.c.b16 %v500, %v498
    %v627 = vpack.c.b16 %v501, %v499
    %v628 = vpack.c.b16 %v504, %v502
    %v629 = vpack.c.b16 %v505, %v503
    %v630 = vpack.c.b16 %v508, %v506
    %v631 = vpack.c.b16 %v509, %v507
    %v632 = vpack.c.b16 %v512, %v510
    %v633 = vpack.c.b16 %v513, %v511
    %v634 = vpack.c.b16 %v516, %v514
    %v635 = vpack.c.b16 %v517, %v515
    %v636 = vpack.c.b16 %v520, %v518
    %v637 = vpack.c.b16 %v521, %v519
    %v638 = vpack.c.b16 %v524, %v522
    %v639 = vpack.c.b16 %v525, %v523
    %v640 = vpack.c.b16 %v528, %v526
    %v641 = vpack.c.b16 %v529, %v527
    %v642 = vpack.c.b16 %v532, %v530
    %v643 = vpack.c.b16 %v533, %v531
    %v644 = vpack.c.b16 %v536, %v534
    %v645 = vpack.c.b16 %v537, %v535
    %v646 = vpack.c.b16 %v540, %v538
    %v647 = vpack.c.b16 %v541, %v539
    %v648 = vpack.c.b16 %v544, %v542
    %v649 = vpack.c.b16 %v545, %v543
    %v650 = vpack.c.b16 %v548, %v546
    %v651 = vpack.c.b16 %v549, %v547
    %v652 = vpack.c.b16 %v552, %v550
    %v653 = vpack.c.b16 %v553, %v551
    %v654 = vpack.c.b16 %v556, %v554
    %v655 = vpack.c.b16 %v557, %v555
    %v656 = vpack.c.b16 %v560, %v558
    %v657 = vpack.c.b16 %v561, %v559
    %v658 = vpack.c.b16 %v564, %v562
    %v659 = vpack.c.b16 %v565, %v563
    %v660 = vpack.c.b16 %v568, %v566
    %v661 = vpack.c.b16 %v569, %v567
    %v662 = vpack.c.b16 %v572, %v570
    %v663 = vpack.c.b16 %v573, %v571
    %v664 = vpack.c.b16 %v576, %v574
    %v665 = vpack.c.b16 %v577, %v575
    %v666 = vpack.c.b16 %v580, %v578
    %v667 = vpack.c.b16 %v581, %v579
    %v668 = vpack.c.b16 %v584, %v582
    %v669 = vpack.c.b16 %v585, %v583
    %v670 = vpack.c.b16 %v588, %v586
    %v671 = vpack.c.b16 %v589, %v587
    %v672 = vpack.c.b16 %v592, %v590
    %v673 = vpack.c.b16 %v593, %v591
    %v674 = vpack.c.b16 %v596, %v594
    %v675 = vpack.c.b16 %v597, %v595
    %v676 = vpack.c.b16 %v600, %v598
    %v677 = vpack.c.b16 %v601, %v599
    %v678 = vpack.c.b16 %v604, %v602
    %v679 = vpack.c.b16 %v605, %v603
    %v680 = vpack.c.b16 %v608, %v606
    %v681 = vpack.c.b16 %v609, %v607
    %v682 = vpack.c.b16 %v612, %v610
    %v683 = vpack.c.b16 %v613, %v611
    %v684 = vpack.c.b16 %v616, %v614
    %v685 = vpack.c.b16 %v617, %v615
    %v686 = vpack.c.b16 %v620, %v618
    %v687 = vpack.c.b16 %v621, %v619
    %v688 = vpack.c.b16 %v624, %v622
    %v689 = vpack.c.b16 %v625, %v623
    %754 = vmatpush.bf16.msra.mxu0 %v640
    %755 = vmatpush.bf16.msra.mxu0 %v638
    %756 = vmatpush.bf16.msra.mxu0 %v636
    %757 = vmatpush.bf16.msra.mxu0 %v634
    %758 = vmatpush.bf16.msra.mxu0 %v632
    %759 = vmatpush.bf16.msra.mxu0 %v630
    %760 = vmatpush.bf16.msra.mxu0 %v628
    %761 = vmatpush.bf16.msra.mxu0 %v626
    %762 = vmatmul.bf16.gmra.mxu0 %v360
    %v763 = vpop.f32.mrf.mxu0
    %v764 = vadd.f32 %v430, %v763
    %v765 = vpop.f32.mrf.mxu0
    %766 = vdwg.mxu0
    %767 = vmatpush.bf16.msra.mxu0 %v656
    %768 = vmatpush.bf16.msra.mxu0 %v654
    %769 = vmatpush.bf16.msra.mxu0 %v652
    %770 = vmatpush.bf16.msra.mxu0 %v650
    %771 = vmatpush.bf16.msra.mxu0 %v648
    %772 = vmatpush.bf16.msra.mxu0 %v646
    %773 = vmatpush.bf16.msra.mxu0 %v644
    %774 = vmatpush.bf16.msra.mxu0 %v642
    %775 = vmatmul.bf16.gmra.mxu0 %v361
    %v776 = vpop.f32.mrf.mxu0
    %v777 = vadd.f32 %v764, %v776
    %v778 = vpop.f32.mrf.mxu0
    %779 = vdwg.mxu0
    %780 = vmatpush.bf16.msra.mxu0 %v672
    %781 = vmatpush.bf16.msra.mxu0 %v670
    %782 = vmatpush.bf16.msra.mxu0 %v668
    %783 = vmatpush.bf16.msra.mxu0 %v666
    %784 = vmatpush.bf16.msra.mxu0 %v664
    %785 = vmatpush.bf16.msra.mxu0 %v662
    %786 = vmatpush.bf16.msra.mxu0 %v660
    %787 = vmatpush.bf16.msra.mxu0 %v658
    %788 = vmatmul.bf16.gmra.mxu0 %v362
    %v789 = vpop.f32.mrf.mxu0
    %v790 = vadd.f32 %v777, %v789
    %v791 = vpop.f32.mrf.mxu0
    %792 = vdwg.mxu0
    %793 = vmatpush.bf16.msra.mxu0 %v688
    %794 = vmatpush.bf16.msra.mxu0 %v686
    %795 = vmatpush.bf16.msra.mxu0 %v684
    %796 = vmatpush.bf16.msra.mxu0 %v682
    %797 = vmatpush.bf16.msra.mxu0 %v680
    %798 = vmatpush.bf16.msra.mxu0 %v678
    %799 = vmatpush.bf16.msra.mxu0 %v676
    %800 = vmatpush.bf16.msra.mxu0 %v674
    %801 = vmatmul.bf16.gmra.mxu0 %v363
    %v802 = vpop.f32.mrf.mxu0
    %v803 = vadd.f32 %v790, %v802
    %v804 = vpop.f32.mrf.mxu0
    %805 = vdwg.mxu0
    %806 = vmatpush.bf16.msra.mxu0 %v641
    %807 = vmatpush.bf16.msra.mxu0 %v639
    %808 = vmatpush.bf16.msra.mxu0 %v637
    %809 = vmatpush.bf16.msra.mxu0 %v635
    %810 = vmatpush.bf16.msra.mxu0 %v633
    %811 = vmatpush.bf16.msra.mxu0 %v631
    %812 = vmatpush.bf16.msra.mxu0 %v629
    %813 = vmatpush.bf16.msra.mxu0 %v627
    %814 = vmatmul.bf16.gmra.mxu0 %v360
    %v815 = vpop.f32.mrf.mxu0
    %v816 = vadd.f32 %v431, %v815
    %v817 = vpop.f32.mrf.mxu0
    %818 = vdwg.mxu0
    %819 = vmatpush.bf16.msra.mxu0 %v657
    %820 = vmatpush.bf16.msra.mxu0 %v655
    %821 = vmatpush.bf16.msra.mxu0 %v653
    %822 = vmatpush.bf16.msra.mxu0 %v651
    %823 = vmatpush.bf16.msra.mxu0 %v649
    %824 = vmatpush.bf16.msra.mxu0 %v647
    %825 = vmatpush.bf16.msra.mxu0 %v645
    %826 = vmatpush.bf16.msra.mxu0 %v643
    %827 = vmatmul.bf16.gmra.mxu0 %v361
    %v828 = vpop.f32.mrf.mxu0
    %v829 = vadd.f32 %v816, %v828
    %v830 = vpop.f32.mrf.mxu0
    %831 = vdwg.mxu0
    %832 = vmatpush.bf16.msra.mxu0 %v673
    %833 = vmatpush.bf16.msra.mxu0 %v671
    %834 = vmatpush.bf16.msra.mxu0 %v669
    %835 = vmatpush.bf16.msra.mxu0 %v667
    %836 = vmatpush.bf16.msra.mxu0 %v665
    %837 = vmatpush.bf16.msra.mxu0 %v663
    %838 = vmatpush.bf16.msra.mxu0 %v661
    %839 = vmatpush.bf16.msra.mxu0 %v659
    %840 = vmatmul.bf16.gmra.mxu0 %v362
    %v841 = vpop.f32.mrf.mxu0
    %v842 = vadd.f32 %v829, %v841
    %v843 = vpop.f32.mrf.mxu0
    %844 = vdwg.mxu0
    %845 = vmatpush.bf16.msra.mxu0 %v689
    %846 = vmatpush.bf16.msra.mxu0 %v687
    %847 = vmatpush.bf16.msra.mxu0 %v685
    %848 = vmatpush.bf16.msra.mxu0 %v683
    %849 = vmatpush.bf16.msra.mxu0 %v681
    %850 = vmatpush.bf16.msra.mxu0 %v679
    %851 = vmatpush.bf16.msra.mxu0 %v677
    %852 = vmatpush.bf16.msra.mxu0 %v675
    %853 = vmatmul.bf16.gmra.mxu0 %v363
    %v854 = vpop.f32.mrf.mxu0
    %v855 = vadd.f32 %v842, %v854
    %v856 = vpop.f32.mrf.mxu0
    %857 = vdwg.mxu0
    %v858 = vmax.f32 %v803, 0.0
    %v859 = vmax.f32 %v855, 0.0
    %v860 = vpack.c.bf16 %v858, %v858
    %v861 = vpack.c.bf16 %v859, %v859
    %v862 = vld [vmem:[#allocation10] sm:$0xf]
    %v863 = vld [vmem:[#allocation10 + $0x4] sm:$0xf]
    %v864 = vld [vmem:[#allocation10 + $0x8] sm:$0xf]
    %v865 = vld [vmem:[#allocation10 + $0xc] sm:$0xf]
    %v866 = vld [vmem:[#allocation10 + $0x10] sm:$0xf]
    %v867 = vld [vmem:[#allocation10 + $0x14] sm:$0xf]
    %v868 = vld [vmem:[#allocation10 + $0x18] sm:$0xf]
    %v869 = vld [vmem:[#allocation10 + $0x1c] sm:$0xf]
    %v870 = vld [vmem:[#allocation10 + $0x20] sm:$0xf]
    %v871 = vld [vmem:[#allocation10 + $0x24] sm:$0xf]
    %v872 = vld [vmem:[#allocation10 + $0x28] sm:$0xf]
    %v873 = vld [vmem:[#allocation10 + $0x2c] sm:$0xf]
    %v874 = vld [vmem:[#allocation10 + $0x30] sm:$0xf]
    %v875 = vld [vmem:[#allocation10 + $0x34] sm:$0xf]
    %v876 = vld [vmem:[#allocation10 + $0x38] sm:$0xf]
    %v877 = vld [vmem:[#allocation10 + $0x3c] sm:$0xf]
    %v878 = vld [vmem:[#allocation10 + $0x40] sm:$0xf]
    %v879 = vld [vmem:[#allocation10 + $0x44] sm:$0xf]
    %v880 = vld [vmem:[#allocation10 + $0x48] sm:$0xf]
    %v881 = vld [vmem:[#allocation10 + $0x4c] sm:$0xf]
    %v882 = vld [vmem:[#allocation10 + $0x50] sm:$0xf]
    %v883 = vld [vmem:[#allocation10 + $0x54] sm:$0xf]
    %v884 = vld [vmem:[#allocation10 + $0x58] sm:$0xf]
    %v885 = vld [vmem:[#allocation10 + $0x5c] sm:$0xf]
    %v886 = vld [vmem:[#allocation10 + $0x60] sm:$0xf]
    %v887 = vld [vmem:[#allocation10 + $0x64] sm:$0xf]
    %v888 = vld [vmem:[#allocation10 + $0x68] sm:$0xf]
    %v889 = vld [vmem:[#allocation10 + $0x6c] sm:$0xf]
    %v890 = vld [vmem:[#allocation10 + $0x70] sm:$0xf]
    %v891 = vld [vmem:[#allocation10 + $0x74] sm:$0xf]
    %v892 = vld [vmem:[#allocation10 + $0x78] sm:$0xf]
    %v893 = vld [vmem:[#allocation10 + $0x7c] sm:$0xf]
    %v894 = vld [vmem:[%s6] sm:$0x1]
    %v896 = vperm.slane %v894, 0
    %v930 = vunpack.c.l.b16 %v862
    %v931 = vunpack.c.l.b16 %v863
    %v932 = vunpack.c.l.b16 %v864
    %v933 = vunpack.c.l.b16 %v865
    %v934 = vunpack.c.l.b16 %v866
    %v935 = vunpack.c.l.b16 %v867
    %v936 = vunpack.c.l.b16 %v868
    %v937 = vunpack.c.l.b16 %v869
    %v938 = vunpack.c.l.b16 %v870
    %v939 = vunpack.c.l.b16 %v871
    %v940 = vunpack.c.l.b16 %v872
    %v941 = vunpack.c.l.b16 %v873
    %v942 = vunpack.c.l.b16 %v874
    %v943 = vunpack.c.l.b16 %v875
    %v944 = vunpack.c.l.b16 %v876
    %v945 = vunpack.c.l.b16 %v877
    %v946 = vunpack.c.l.b16 %v878
    %v947 = vunpack.c.l.b16 %v879
    %v948 = vunpack.c.l.b16 %v880
    %v949 = vunpack.c.l.b16 %v881
    %v950 = vunpack.c.l.b16 %v882
    %v951 = vunpack.c.l.b16 %v883
    %v952 = vunpack.c.l.b16 %v884
    %v953 = vunpack.c.l.b16 %v885
    %v954 = vunpack.c.l.b16 %v886
    %v955 = vunpack.c.l.b16 %v887
    %v956 = vunpack.c.l.b16 %v888
    %v957 = vunpack.c.l.b16 %v889
    %v958 = vunpack.c.l.b16 %v890
    %v959 = vunpack.c.l.b16 %v891
    %v960 = vunpack.c.l.b16 %v892
    %v961 = vunpack.c.l.b16 %v893
    %v962 = vpack.c.b16 %v931, %v930
    %v963 = vpack.c.b16 %v933, %v932
    %v964 = vpack.c.b16 %v935, %v934
    %v965 = vpack.c.b16 %v937, %v936
    %v966 = vpack.c.b16 %v939, %v938
    %v967 = vpack.c.b16 %v941, %v940
    %v968 = vpack.c.b16 %v943, %v942
    %v969 = vpack.c.b16 %v945, %v944
    %v970 = vpack.c.b16 %v947, %v946
    %v971 = vpack.c.b16 %v949, %v948
    %v972 = vpack.c.b16 %v951, %v950
    %v973 = vpack.c.b16 %v953, %v952
    %v974 = vpack.c.b16 %v955, %v954
    %v975 = vpack.c.b16 %v957, %v956
    %v976 = vpack.c.b16 %v959, %v958
    %v977 = vpack.c.b16 %v961, %v960
    %994 = vmatpush.bf16.msra.mxu0 %v969
    %995 = vmatpush.bf16.msra.mxu0 %v968
    %996 = vmatpush.bf16.msra.mxu0 %v967
    %997 = vmatpush.bf16.msra.mxu0 %v966
    %998 = vmatpush.bf16.msra.mxu0 %v965
    %999 = vmatpush.bf16.msra.mxu0 %v964
    %1000 = vmatpush.bf16.msra.mxu0 %v963
    %1001 = vmatpush.bf16.msra.mxu0 %v962
    %1002 = vmatmul.bf16.gmra.mxu0 %v860
    %v1003 = vpop.f32.mrf.mxu0
    %v1004 = vadd.f32 %v896, %v1003
    %v1005 = vpop.f32.mrf.mxu0
    %1006 = vdwg.mxu0
    %1007 = vmatpush.bf16.msra.mxu0 %v977
    %1008 = vmatpush.bf16.msra.mxu0 %v976
    %1009 = vmatpush.bf16.msra.mxu0 %v975
    %1010 = vmatpush.bf16.msra.mxu0 %v974
    %1011 = vmatpush.bf16.msra.mxu0 %v973
    %1012 = vmatpush.bf16.msra.mxu0 %v972
    %1013 = vmatpush.bf16.msra.mxu0 %v971
    %1014 = vmatpush.bf16.msra.mxu0 %v970
    %1015 = vmatmul.bf16.gmra.mxu0 %v861
    %v1016 = vpop.f32.mrf.mxu0
    %v1017 = vadd.f32 %v1004, %v1016
    %v1018 = vpop.f32.mrf.mxu0
    %1019 = vdwg.mxu0
    %1020 = vst [vmem:[#allocation11] sm:$0xff] %v1017
    // Predicated region
    $region50: #{tpu_custom_call.1} parent=1 // pred_check
      _
    $region51: #{tpu_custom_call.1} parent=1 // pred_check_branch
      %1022 = sbr.rel (0) target = $region53
    $region52: #{tpu_custom_call.1} parent=1 // pred_region
      %1024 = vsyncadd [#allocation4], 0
      %s1026 = sshll.u32 [#allocation11], 4
      %s1027 = int_to_ptr.vmem [resolvable:$true] %s1026
      %s1028 = sshll.u32 %s7, 4
      %s1029 = int_to_ptr.hbm [resolvable:$true] %s1028
      %1031 = dma.vmem_to_hbm [thread:$0]  %s1027, 128, %s1029, [#allocation4]
    $region53: #{tpu_custom_call.1} parent=1 // pred_fallthru
      _
    // Predicated region
    $region54: #{tpu_custom_call.1} parent=1 // pred_check
      _
    $region55: #{tpu_custom_call.1} parent=1 // pred_check_branch
      %1033 = sbr.rel (0) target = $region57
    $region56: #{tpu_custom_call.1} parent=1 // pred_region
      %1035 = dma.done [#allocation4], 128
    $region57: #{tpu_custom_call.1} parent=1 // pred_fallthru
      _
    %1036 = vsyncpa [#allocation3], 1
    %1037 = vsyncpa [#allocation6], 1
    %1038 = vsyncpa [#allocation9], 1
    %1039 = vsyncpa [#allocation4], 1

</llo_original>
